<compile_context>
chip_gen: v6e
topology: v6e:2x2x1
jax: 0.10.0
libtpu: 0.0.40
codegen_flags: <defaults>
</compile_context>

<pallas_src>
import jax
import jax.numpy as jnp
from jax.experimental import pallas as pl
from jax.experimental.pallas import tpu as pltpu


def build_positional_table(max_seq: int, d_emb: int) -> jnp.ndarray:
    """Deterministic parameter init, mirroring PositionalEmbedding.__init__."""
    i_emb = jnp.arange(d_emb, dtype=jnp.float32)                  # (d_emb,)
    i_seq = jnp.arange(max_seq, dtype=jnp.float32)[:, None]       # (max_seq, 1)
    angle = i_seq * jnp.power(jnp.float32(10000.0), -2.0 * i_emb / jnp.float32(d_emb))
    even_col = (jnp.arange(d_emb) % 2) == 0
    table = jnp.where(even_col[None, :], jnp.sin(angle), jnp.cos(angle))
    return table.astype(jnp.float32)                              # (max_seq, d_emb)


def _copy_rows_kernel(t_ref, o_ref):
    # t_ref : VMEM (TM, W)  -- block i of the (folded) frozen table
    # o_ref : VMEM (TM, W)  -- block i of the (folded) output
    o_ref[...] = t_ref[...]


def _fold_factor(n_seq: int, max_seq: int, d_emb: int) -> int:
    """Fold k sequence rows into the lane axis so the last dim is lane-dense."""
    if d_emb % 128 == 0:
        return 1
    if 128 % d_emb == 0:
        k = 128 // d_emb
        if n_seq % k == 0 and max_seq % k == 0:
            return k
    return 1  # fallback: last dim == full array dim, still a legal block


def _pick_tm(n_rows: int, width: int) -> int:
    """Rows per block: multiple of 8, <= 512, VMEM-budgeted (~8 MiB total)."""
    # double-buffered input + output blocks: 4 * TM * width * 4 B
    budget_elems = (8 * 1024 * 1024) // (4 * 4)
    tm_budget = max(8, (budget_elems // max(width, 1)) // 8 * 8)
    tm_rows = ((n_rows + 7) // 8) * 8          # round rows up to a multiple of 8
    return max(8, min(512, tm_rows, tm_budget))


def positional_embedding_forward(x: jnp.ndarray, table: jnp.ndarray) -> jnp.ndarray:
    """Pallas equivalent of PositionalEmbedding.forward(x): table[:n_seq]."""
    n_seq = x.shape[-1]
    max_seq, d_emb = table.shape
    assert n_seq <= max_seq, "requested sequence length exceeds table size"

    # Lane-dense folding: (R, d_emb) -> (R//k, k*d_emb) with k*d_emb % 128 == 0
    # when possible.  Contiguous row-major reshape => free in XLA.
    k = _fold_factor(n_seq, max_seq, d_emb)
    n_rows = n_seq // k
    width = k * d_emb
    folded_table = table.reshape(max_seq // k, width)

    tm = _pick_tm(n_rows, width)
    grid = (pl.cdiv(n_rows, tm),)

    out_folded = pl.pallas_call(
        _copy_rows_kernel,
        out_shape=jax.ShapeDtypeStruct((n_rows, width), jnp.float32),
        grid=grid,
        in_specs=[pl.BlockSpec((tm, width), lambda i: (i, 0))],
        out_specs=pl.BlockSpec((tm, width), lambda i: (i, 0)),
        compiler_params=pltpu.CompilerParams(
            dimension_semantics=("parallel",),   # independent rows -> both TCs on v7x
        ),
    )(folded_table)

    return out_folded.reshape(n_seq, d_emb)


if __name__ == "__main__":
    # Small config: max positions 16, d_emb 32; input token ids (batch=2, seq=8).
    max_seq, d_emb = 16, 32
    batch, n_seq = 2, 8

    key = jax.random.PRNGKey(0)
    x = jax.random.randint(key, (batch, n_seq), 0, 100, dtype=jnp.int32)

    table = build_positional_table(max_seq, d_emb)          # frozen "parameter"
    out = positional_embedding_forward(x, table)
    out = jax.block_until_ready(out)

    # Pure-JAX reference of the forward pass: embedding(arange(n_seq)) == table[:n_seq].
    ref = table[:n_seq]
    assert out.shape == (n_seq, d_emb), out.shape
    assert out.dtype == jnp.float32, out.dtype
    assert bool(jnp.allclose(out, ref, atol=0.0, rtol=0.0)), "mismatch vs reference"

    print("KERNEL_OK")
</pallas_src>

<mosaic_0001>
module attributes {stable_mosaic.version = 11 : i64} {
  func.func @_copy_rows_kernel(%arg0: i32, %arg1: memref<8x128xf32, #tpu.memory_space<vmem>>, %arg2: memref<8x128xf32, #tpu.memory_space<vmem>>) attributes {dimension_semantics = [#tpu.dimension_semantics<parallel>], iteration_bounds = array<i64: 1>, scalar_prefetch = 0 : i64, scratch_operands = 0 : i64, tpu.core_type = #tpu.core_type<tc>, window_params = [{transform_indices = @transform_0, window_bounds = array<i64: 8, 128>}, {transform_indices = @transform_1, window_bounds = array<i64: 8, 128>}]} {
    %c0 = arith.constant 0 : index
    %c0_0 = arith.constant 0 : index
    %0 = vector.load %arg1[%c0, %c0_0] : memref<8x128xf32, #tpu.memory_space<vmem>>, vector<8x128xf32>
    %c0_1 = arith.constant 0 : index
    %c0_2 = arith.constant 0 : index
    %1 = vector.load %arg2[%c0_1, %c0_2] : memref<8x128xf32, #tpu.memory_space<vmem>>, vector<8x128xf32>
    tpu.vector_store %arg2[%c0_1, %c0_2], %0 {strides = array<i32>} : memref<8x128xf32, #tpu.memory_space<vmem>>, vector<8x128xf32>,
    return
  }
  func.func @transform_0(%arg0: i32) -> (i32, i32) {
    %c0_i32 = arith.constant 0 : i32
    %c0_i32_0 = arith.constant 0 : i32
    return %arg0, %c0_i32 : i32, i32
  }
  func.func @transform_1(%arg0: i32) -> (i32, i32) {
    %c0_i32 = arith.constant 0 : i32
    %c0_i32_0 = arith.constant 0 : i32
    return %arg0, %c0_i32 : i32, i32
  }
}

</mosaic_0001>

<llo_original>
// kernel: tpu_custom_call.1
$region0: #{tpu_custom_call.1}
  #allocation0 [shape = 'u32[]', space=smem, size = 0x4, offset = 0x4, fixed_abs, tag = 'smem constant byte address 0x4 - core index']
  #allocation1 [shape = 'u32[144,128]{1,0:T(1,128)}', space=vmem, size = 0x12000, scoped, tag = 'internal scratch']
  %s0 = inlined_call_operand.hbm [shape: f32[4,128], index: 0, kind: input, shape index: {}]
  %s1 = inlined_call_operand.hbm [shape: f32[2,128], index: 1, kind: output, shape index: {}]
  %s2 = sld [smem:[#allocation0]]
  $region18: #{tpu_custom_call.1} parent=0
    _
  %s4 = ssub.s32 1, %s2
  %s5 = scalar_select 0, %s4, %s2
  $region1: #{tpu_custom_call.1} parent=0
    #allocation2 [shape = 'u8[4096]{0}', space=vmem, size = 0x1000, scoped, tag = 'input window, operand 0, single buffered']
    #allocation3 [shape = 's32[1]{0}', space=sflag, size = 0x4, scoped, tag = 'scoped memory for tpu_custom_call.1']
    #allocation4 [shape = 's32[1]{0}', space=sflag, size = 0x4, scoped, tag = 'scoped memory for tpu_custom_call.1']
    #allocation5 [shape = 'u8[4096]{0}', space=vmem, size = 0x1000, scoped, tag = 'output window, operand 0, single buffered']
    %6 = vsyncpa [#allocation3], 0
    %7 = vsyncpa [#allocation4], 0
    // Predicated region
    $region2: #{tpu_custom_call.1} parent=1 // pred_check
      _
    $region3: #{tpu_custom_call.1} parent=1 // pred_check_branch
      %9 = sbr.rel (0) target = $region5
    $region4: #{tpu_custom_call.1} parent=1 // pred_region
      %s11 = ssub.s32 128, 64
      %12 = vsyncadd [#allocation3], %s11
      %s13 = sshll.u32 [#allocation2], 4
      %s14 = int_to_ptr.vmem [resolvable:$true] %s13
      %19 = dma.hbm_to_vmem [thread:$0]  %s0, 64, %s14, [#allocation3], 64, 64, 4
    $region5: #{tpu_custom_call.1} parent=1 // pred_fallthru
      _
    // Predicated region
    $region6: #{tpu_custom_call.1} parent=1 // pred_check
      _
    $region7: #{tpu_custom_call.1} parent=1 // pred_check_branch
      %21 = sbr.rel (0) target = $region9
    $region8: #{tpu_custom_call.1} parent=1 // pred_region
      %22 = dma.done [#allocation3], 128
    $region9: #{tpu_custom_call.1} parent=1 // pred_fallthru
      _
    %v23 = vld [vmem:[#allocation2] sm:$0xff]
    %24 = vst [vmem:[#allocation5] sm:$0xff] %v23
    // Predicated region
    $region10: #{tpu_custom_call.1} parent=1 // pred_check
      _
    $region11: #{tpu_custom_call.1} parent=1 // pred_check_branch
      %26 = sbr.rel (0) target = $region13
    $region12: #{tpu_custom_call.1} parent=1 // pred_region
      %s28 = ssub.s32 128, 32
      %29 = vsyncadd [#allocation4], %s28
      %s30 = sshll.u32 [#allocation5], 4
      %s31 = int_to_ptr.vmem [resolvable:$true] %s30
      %36 = dma.vmem_to_hbm [thread:$0]  %s31, 32, %s1, [#allocation4], 32, 32, 2
    $region13: #{tpu_custom_call.1} parent=1 // pred_fallthru
      _
    // Predicated region
    $region14: #{tpu_custom_call.1} parent=1 // pred_check
      _
    $region15: #{tpu_custom_call.1} parent=1 // pred_check_branch
      %38 = sbr.rel (0) target = $region17
    $region16: #{tpu_custom_call.1} parent=1 // pred_region
      %39 = dma.done [#allocation4], 128
    $region17: #{tpu_custom_call.1} parent=1 // pred_fallthru
      _
    %40 = vsyncpa [#allocation3], 1
    %41 = vsyncpa [#allocation4], 1

</llo_original>
